<compile_context>
chip_gen: v7x
topology: tpu7x:2x2x1
jax: 0.10.0
libtpu: 0.0.40
codegen_flags: <defaults>
</compile_context>

<pallas_src>
import functools

import jax
import jax.numpy as jnp
from jax import lax
from jax.experimental import pallas as pl
from jax.experimental.pallas import tpu as pltpu

_LANE = 128
_SUB = 8
_ROW_ALIGN = 32            # sublane alignment safe for f32 / bf16 / 8-bit inputs


def _round_up(v, m):
    return ((v + m - 1) // m) * m


@functools.lru_cache(maxsize=None)
def _detect_num_tensorcores():
    """TensorCores per chip (2 on v7x, 1 on v5e/v6e).  Safe fallback: 1."""
    try:
        info = pltpu.get_tpu_info()
    except Exception:
        return 1
    for attr in ("num_cores", "core_count", "num_tensorcores", "tensor_core_count"):
        v = getattr(info, attr, None)
        try:
            v = int(v)
        except (TypeError, ValueError):
            continue
        if v > 0:
            return v
    return 1


def _choose_tiling(rows, num_parallel, max_tile_rows, max_chunk_rows):
    """Pick (num_parallel, inner_steps, tile_rows, chunk_rows, n_chunks).

    Steps are balanced so padding never exceeds one small sliver (handled by
    a partial last block, not a wrapper pad).  num_parallel is reduced until
    every (core, step) block starts in bounds (no fully-OOB blocks).
    """
    num_parallel = max(1, int(num_parallel))
    max_tile_rows = _round_up(max(int(max_tile_rows), _ROW_ALIGN), _ROW_ALIGN)
    max_chunk_rows = min(
        _round_up(max(int(max_chunk_rows), _ROW_ALIGN), _ROW_ALIGN), max_tile_rows)
    while True:
        rows_per_core = pl.cdiv(rows, num_parallel)
        steps0 = pl.cdiv(rows_per_core, max_tile_rows)
        ideal = pl.cdiv(rows_per_core, steps0)
        n_chunks = pl.cdiv(ideal, max_chunk_rows)
        chunk_rows = _round_up(pl.cdiv(ideal, n_chunks), _ROW_ALIGN)
        tile_rows = n_chunks * chunk_rows
        inner_steps = pl.cdiv(rows_per_core, tile_rows)
        # Guarantee the very last block still starts inside the array.
        if num_parallel == 1 or (num_parallel * inner_steps - 1) * tile_rows < rows:
            return num_parallel, inner_steps, tile_rows, chunk_rows, n_chunks
        num_parallel -= 1


def _mixed_loss_kernel(x_ref, t_ref, out_ref, *, gamma, n_valid, inner_steps,
                       tile_rows, chunk_rows, n_chunks, binary_targets,
                       approx_recip, padding_possible):
    p = pl.program_id(0)          # parallel slice (TensorCore on v7x)
    i = pl.program_id(1)          # reduction step within the slice

    @pl.when(i == 0)
    def _():
        out_ref[...] = jnp.zeros_like(out_ref)

    base_row = (p * inner_steps + i) * tile_rows
    full_rows = n_valid // _LANE          # static
    rem = n_valid % _LANE                 # static
    g = float(gamma)
    int_gamma = (g == float(int(g))) and (0 < int(g) <= 4)

    def tile_sums(apply_mask):
        zero8 = jnp.zeros((_SUB, _LANE), jnp.float32)
        f_acc, st_acc, s_acc, t_acc = zero8, zero8, zero8, zero8
        # Chunked elementwise pass: only (chunk_rows, 128) temporaries are
        # live at once, so VMEM stays input-double-buffer dominated even for
        # multi-thousand-row tiles (important for v7x's 64 MiB VMEM).
        for c in range(n_chunks):
            r0 = c * chunk_rows                               # static start
            x = x_ref[pl.ds(r0, chunk_rows), :].astype(jnp.float32)
            t = t_ref[pl.ds(r0, chunk_rows), :].astype(jnp.float32)

            # BCE-with-logits (exact simplification of the PyTorch forward):
            #   x - x*t + max(-x,0) + log(exp(-max)+exp(-x-max))
            #     == max(x,0) - x*t + log(1 + exp(-|x|))
            ex = jnp.exp(-jnp.abs(x))                         # EUP
            one_p_ex = 1.0 + ex
            log_term = jnp.log(one_p_ex)                      # EUP
            bce = jnp.maximum(x, 0.0) - x * t + log_term

            # sigmoid(x), reusing exp(-|x|); one EUP reciprocal, no divide.
            r_ex = pl.reciprocal(one_p_ex, approx=approx_recip)
            sig = jnp.where(x >= 0.0, r_ex, ex * r_ex)

            # focal modulation = sigmoid(-x*(2t-1)) ** gamma
            if binary_targets:
                # t in {0,1}: sigmoid(-x*(2t-1)) == (1-t)*sig + t*(1-sig);
                # reuses ex / r_ex -> no second exp, no second reciprocal.
                sz = sig + t * (1.0 - 2.0 * sig)
                if int_gamma:
                    mod = sz
                    for _ in range(int(g) - 1):
                        mod = mod * sz
                else:
                    zb = x * (1.0 - 2.0 * t)                  # |zb| == |x|
                    mod = jnp.exp(g * (jnp.minimum(zb, 0.0) - log_term))
            else:
                z = -x * (t * 2.0 - 1.0)
                ez = jnp.exp(-jnp.abs(z))
                one_p_ez = 1.0 + ez
                r_ez = pl.reciprocal(one_p_ez, approx=approx_recip)
                sz = jnp.where(z >= 0.0, r_ez, ez * r_ez)
                if int_gamma:
                    mod = sz
                    for _ in range(int(g) - 1):
                        mod = mod * sz
                else:
                    mod = jnp.exp(g * (jnp.minimum(z, 0.0) - jnp.log(one_p_ez)))

            focal = mod * bce
            sig_t = sig * t

            if apply_mask:
                # Zero contributions from padded / out-of-bounds elements.
                row = base_row + r0 + lax.broadcasted_iota(jnp.int32, x.shape, 0)
                lane = lax.broadcasted_iota(jnp.int32, x.shape, 1)
                valid = (row < full_rows) | ((row == full_rows) & (lane < rem))
                zero = jnp.zeros_like(focal)
                focal = jnp.where(valid, focal, zero)
                sig_t = jnp.where(valid, sig_t, zero)
                sig = jnp.where(valid, sig, zero)
                t = jnp.where(valid, t, zero)

            # Deferred reduction: fold each quantity down to one (8,128) vreg
            # with plain VPU adds and accumulate (carried in vregs).
            ns = chunk_rows // _SUB
            f_acc = f_acc + jnp.sum(focal.reshape(ns, _SUB, _LANE), axis=0)
            st_acc = st_acc + jnp.sum(sig_t.reshape(ns, _SUB, _LANE), axis=0)
            s_acc = s_acc + jnp.sum(sig.reshape(ns, _SUB, _LANE), axis=0)
            t_acc = t_acc + jnp.sum(t.reshape(ns, _SUB, _LANE), axis=0)
        return f_acc, st_acc, s_acc, t_acc

    if padding_possible:
        # The masking work (iotas + selects) only runs on tiles that actually
        # touch the ragged tail; steady-state tiles take the plain branch.
        tile_touches_tail = base_row + tile_rows > full_rows
        f_acc, st_acc, s_acc, t_acc = lax.cond(
            tile_touches_tail,
            lambda _: tile_sums(True),
            lambda _: tile_sums(False),
            None)
    else:
        f_acc, st_acc, s_acc, t_acc = tile_sums(False)

    # Four separate lane-dense (8,128) accumulates (no stack/relayout).
    out_ref[0, 0, :, :] = out_ref[0, 0, :, :] + f_acc
    out_ref[0, 1, :, :] = out_ref[0, 1, :, :] + st_acc
    out_ref[0, 2, :, :] = out_ref[0, 2, :, :] + s_acc
    out_ref[0, 3, :, :] = out_ref[0, 3, :, :] + t_acc


def mixed_loss(x, target, alpha=10.0, gamma=2.0, *, binary_targets=True,
               approx_reciprocal=True, max_tile_rows=8192, max_chunk_rows=1024,
               num_parallel=None):
    """Pallas-TPU MixedLoss.  x, target: same-shape tensors (e.g. NCHW).

    binary_targets=True assumes target values are in {0, 1} (segmentation
    masks) and enables the single-exp focal fast path; set False for soft
    targets.  approx_reciprocal uses the EUP approximate reciprocal
    (~2^-12 relative error) for the sigmoid reconstruction.
    """
    assert x.shape == target.shape, "Target size must match input size"
    n = int(x.size)
    assert n > 0

    if num_parallel is None:
        num_parallel = _detect_num_tensorcores()

    # Lane-dense slab in native dtypes.  Only pad the flat vector when n is
    # not 128-aligned (at most 127 elements); everything else is handled by a
    # partial last block + the in-kernel mask (no full-array jnp.pad pass).
    lane_pad = (-n) % _LANE
    xf = jnp.ravel(x)
    tf = jnp.ravel(target)
    if lane_pad:
        xf = jnp.pad(xf, (0, lane_pad))
        tf = jnp.pad(tf, (0, lane_pad))
    rows = (n + lane_pad) // _LANE
    xr = xf.reshape(rows, _LANE)
    tr = tf.reshape(rows, _LANE)
    # Keep native floating dtypes (no wrapper casts); only non-float inputs
    # (e.g. integer masks) are promoted here.
    if not jnp.issubdtype(xr.dtype, jnp.floating):
        xr = xr.astype(jnp.float32)
    if not jnp.issubdtype(tr.dtype, jnp.floating):
        tr = tr.astype(jnp.float32)

    num_parallel, inner_steps, tile_rows, chunk_rows, n_chunks = _choose_tiling(
        rows, num_parallel, max_tile_rows, max_chunk_rows)
    coverage_rows = num_parallel * inner_steps * tile_rows
    padding_possible = (coverage_rows * _LANE) > n

    kernel = functools.partial(
        _mixed_loss_kernel,
        gamma=float(gamma),
        n_valid=n,
        inner_steps=inner_steps,
        tile_rows=tile_rows,
        chunk_rows=chunk_rows,
        n_chunks=n_chunks,
        binary_targets=bool(binary_targets),
        approx_recip=bool(approx_reciprocal),
        padding_possible=bool(padding_possible),
    )

    in_map = lambda p, i: (p * inner_steps + i, 0)

    partials = pl.pallas_call(
        kernel,
        out_shape=jax.ShapeDtypeStruct((num_parallel, 4, _SUB, _LANE),
                                       jnp.float32),
        grid_spec=pltpu.PrefetchScalarGridSpec(
            num_scalar_prefetch=0,
            grid=(num_parallel, inner_steps),
            in_specs=[
                pl.BlockSpec((tile_rows, _LANE), in_map),
                pl.BlockSpec((tile_rows, _LANE), in_map),
            ],
            out_specs=pl.BlockSpec((1, 4, _SUB, _LANE),
                                   lambda p, i: (p, 0, 0, 0)),
        ),
        compiler_params=pltpu.CompilerParams(
            dimension_semantics=("parallel", "arbitrary"),
            vmem_limit_bytes=48 * 1024 * 1024,
        ),
    )(xr, tr)

    # Final (tiny) combine in plain JAX: 4 scalars total.
    sums = jnp.sum(partials, axis=(0, 2, 3))   # [focal_sum, sig*t, sig, t]
    focal_mean = sums[0] / jnp.float32(n)
    smooth = jnp.float32(1.0)
    dice = (2.0 * sums[1] + smooth) / (sums[2] + sums[3] + smooth)
    return alpha * focal_mean - jnp.log(dice)


def _mixed_loss_ref(x, target, alpha=10.0, gamma=2.0):
    """Pure-JAX transliteration of the PyTorch MixedLoss forward."""
    x = x.astype(jnp.float32).reshape(-1)
    t = target.astype(jnp.float32).reshape(-1)
    max_val = jnp.maximum(-x, 0.0)
    bce = x - x * t + max_val + jnp.log(jnp.exp(-max_val) + jnp.exp(-x - max_val))
    invprobs = jax.nn.log_sigmoid(-x * (t * 2.0 - 1.0))
    focal = jnp.mean(jnp.exp(invprobs * gamma) * bce)
    sig = jax.nn.sigmoid(x)
    dice = (2.0 * jnp.sum(sig * t) + 1.0) / (jnp.sum(sig) + jnp.sum(t) + 1.0)
    return alpha * focal - jnp.log(dice)


if __name__ == "__main__":
    # MixedLoss hyperparameters (deterministic, set in-script).
    ALPHA, GAMMA = 10.0, 2.0

    key = jax.random.PRNGKey(0)
    k1, k2, k3, k4 = jax.random.split(key, 4)

    # NCHW logits + binary mask: batch=2, channels=4, spatial=16x16.
    x = jax.random.normal(k1, (2, 4, 16, 16), dtype=jnp.float32)
    target = (jax.random.uniform(k2, (2, 4, 16, 16)) > 0.5).astype(jnp.float32)

    # 1) Default fast path: binary targets + approx EUP reciprocal.
    #    The approximate reciprocal carries ~2^-12 relative error, so this
    #    check uses a slightly relaxed tolerance; exactness is pinned by (2).
    loss = mixed_loss(x, target, alpha=ALPHA, gamma=GAMMA)
    loss = jax.block_until_ready(loss)
    ref = _mixed_loss_ref(x, target, alpha=ALPHA, gamma=GAMMA)
    assert jnp.allclose(loss, ref, rtol=1e-2, atol=1e-3), (loss, ref)

    # 2) Binary fast path with exact reciprocal: tight tolerance.
    loss_exact = mixed_loss(x, target, alpha=ALPHA, gamma=GAMMA,
                            approx_reciprocal=False)
    loss_exact = jax.block_until_ready(loss_exact)
    assert jnp.allclose(loss_exact, ref, rtol=1e-4, atol=1e-5), (loss_exact, ref)

    # 3) General path (soft targets), exact reciprocal, awkward
    #    non-128-multiple size to exercise the ragged-tail masking.
    x2 = jax.random.normal(k3, (2, 3, 11, 7), dtype=jnp.float32)
    t2 = jax.random.uniform(k4, (2, 3, 11, 7), dtype=jnp.float32)
    loss2 = mixed_loss(x2, t2, alpha=ALPHA, gamma=GAMMA,
                       binary_targets=False, approx_reciprocal=False)
    loss2 = jax.block_until_ready(loss2)
    ref2 = _mixed_loss_ref(x2, t2, alpha=ALPHA, gamma=GAMMA)
    assert jnp.allclose(loss2, ref2, rtol=1e-4, atol=1e-5), (loss2, ref2)

    print("KERNEL_OK")
</pallas_src>

<mosaic_0001>
module attributes {stable_mosaic.version = 11 : i64} {
  func.func @_mixed_loss_kernel(%arg0: i32, %arg1: i32, %arg2: memref<32x128xf32, #tpu.memory_space<vmem>>, %arg3: memref<32x128xf32, #tpu.memory_space<vmem>>, %arg4: memref<1x4x8x128xf32, #tpu.memory_space<vmem>>) attributes {dimension_semantics = [#tpu.dimension_semantics<parallel>, #tpu.dimension_semantics<arbitrary>], iteration_bounds = array<i64: 1, 1>, scalar_prefetch = 0 : i64, scratch_operands = 0 : i64, tpu.core_type = #tpu.core_type<tc>, window_params = [{transform_indices = @transform_0, window_bounds = array<i64: 32, 128>}, {transform_indices = @transform_1, window_bounds = array<i64: 32, 128>}, {transform_indices = @transform_2, window_bounds = array<i64: 1, 4, 8, 128>}]} {
    %c0_i32 = arith.constant 0 : i32
    %0 = arith.cmpi eq, %arg1, %c0_i32 : i32
    %1 = arith.extui %0 : i1 to i32
    %c0_i32_0 = arith.constant 0 : i32
    %2 = arith.cmpi ne, %1, %c0_i32_0 : i32
    scf.if %2 {
      %cst = arith.constant 0.000000e+00 : f32
      %35 = vector.broadcast %cst : f32 to vector<1x4x8x128xf32>
      %c0_31 = arith.constant 0 : index
      %c0_32 = arith.constant 0 : index
      %c0_33 = arith.constant 0 : index
      %c0_34 = arith.constant 0 : index
      %36 = vector.load %arg4[%c0_31, %c0_32, %c0_33, %c0_34] : memref<1x4x8x128xf32, #tpu.memory_space<vmem>>, vector<1x4x8x128xf32>
      tpu.vector_store %arg4[%c0_31, %c0_32, %c0_33, %c0_34], %35 {strides = array<i32>} : memref<1x4x8x128xf32, #tpu.memory_space<vmem>>, vector<1x4x8x128xf32>,
    } else {
    }
    %c1_i32 = arith.constant 1 : i32
    %3 = arith.muli %arg0, %c1_i32 : i32
    %4 = arith.addi %3, %arg1 : i32
    %c32_i32 = arith.constant 32 : i32
    %5 = arith.muli %4, %c32_i32 : i32
    %c32_i32_1 = arith.constant 32 : i32
    %6 = arith.addi %5, %c32_i32_1 : i32
    %c16_i32 = arith.constant 16 : i32
    %7 = arith.cmpi sgt, %6, %c16_i32 : i32
    %8 = arith.extui %7 : i1 to i32
    %c0_i32_2 = arith.constant 0 : i32
    %9 = arith.cmpi ne, %8, %c0_i32_2 : i32
    %10:4 = scf.if %9 -> (vector<8x128xf32>, vector<8x128xf32>, vector<8x128xf32>, vector<8x128xf32>) {
      %cst = arith.constant 0.000000e+00 : f32
      %35 = vector.broadcast %cst : f32 to vector<8x128xf32>
      %c0_31 = arith.constant 0 : index
      %c0_32 = arith.constant 0 : index
      %36 = vector.load %arg2[%c0_31, %c0_32] : memref<32x128xf32, #tpu.memory_space<vmem>>, vector<32x128xf32>
      %c0_33 = arith.constant 0 : index
      %c0_34 = arith.constant 0 : index
      %37 = vector.load %arg3[%c0_33, %c0_34] : memref<32x128xf32, #tpu.memory_space<vmem>>, vector<32x128xf32>
      %38 = math.absf %36 : vector<32x128xf32>
      %cst_35 = arith.constant 0.000000e+00 : f32
      %39 = vector.broadcast %cst_35 : f32 to vector<32x128xf32>
      %40 = arith.subf %39, %38 : vector<32x128xf32>
      %41 = math.exp %40 : vector<32x128xf32>
      %cst_36 = arith.constant 1.000000e+00 : f32
      %42 = vector.broadcast %cst_36 : f32 to vector<32x128xf32>
      %43 = arith.addf %42, %41 : vector<32x128xf32>
      %44 = math.log %43 : vector<32x128xf32>
      %cst_37 = arith.constant 0.000000e+00 : f32
      %45 = vector.broadcast %cst_37 : f32 to vector<32x128xf32>
      %46 = arith.maximumf %36, %45 : vector<32x128xf32>
      %47 = arith.mulf %36, %37 : vector<32x128xf32>
      %48 = arith.subf %46, %47 : vector<32x128xf32>
      %49 = arith.addf %48, %44 : vector<32x128xf32>
      %50 = tpu.reciprocal %43 {approx = true} : vector<32x128xf32> -> vector<32x128xf32>
      %cst_38 = arith.constant 0.000000e+00 : f32
      %51 = vector.broadcast %cst_38 : f32 to vector<32x128xf32>
      %52 = arith.cmpf oge, %36, %51 : vector<32x128xf32>
      %53 = arith.mulf %41, %50 : vector<32x128xf32>
      %54 = arith.select %52, %50, %53 : vector<32x128xi1>, vector<32x128xf32>
      %cst_39 = arith.constant 2.000000e+00 : f32
      %55 = vector.broadcast %cst_39 : f32 to vector<32x128xf32>
      %56 = arith.mulf %55, %54 : vector<32x128xf32>
      %cst_40 = arith.constant 1.000000e+00 : f32
      %57 = vector.broadcast %cst_40 : f32 to vector<32x128xf32>
      %58 = arith.subf %57, %56 : vector<32x128xf32>
      %59 = arith.mulf %37, %58 : vector<32x128xf32>
      %60 = arith.addf %54, %59 : vector<32x128xf32>
      %61 = arith.mulf %60, %60 : vector<32x128xf32>
      %62 = arith.mulf %61, %49 : vector<32x128xf32>
      %63 = arith.mulf %54, %37 : vector<32x128xf32>
      %c0_i32_41 = arith.constant 0 : i32
      %64 = arith.addi %5, %c0_i32_41 : i32
      %65 = tpu.iota {dimensions = array<i32: 0>} : vector<32x128xi32>
      %66 = vector.broadcast %64 : i32 to vector<32x128xi32>
      %67 = arith.addi %66, %65 : vector<32x128xi32>
      %68 = tpu.iota {dimensions = array<i32: 1>} : vector<32x128xi32>
      %c16_i32_42 = arith.constant 16 : i32
      %69 = vector.broadcast %c16_i32_42 : i32 to vector<32x128xi32>
      %70 = arith.cmpi slt, %67, %69 : vector<32x128xi32>
      %c16_i32_43 = arith.constant 16 : i32
      %71 = vector.broadcast %c16_i32_43 : i32 to vector<32x128xi32>
      %72 = arith.cmpi eq, %67, %71 : vector<32x128xi32>
      %c0_i32_44 = arith.constant 0 : i32
      %73 = vector.broadcast %c0_i32_44 : i32 to vector<32x128xi32>
      %74 = arith.cmpi slt, %68, %73 : vector<32x128xi32>
      %75 = arith.andi %72, %74 : vector<32x128xi1>
      %76 = arith.ori %70, %75 : vector<32x128xi1>
      %cst_45 = arith.constant 0.000000e+00 : f32
      %77 = vector.broadcast %cst_45 : f32 to vector<32x128xf32>
      %78 = arith.select %76, %62, %77 : vector<32x128xi1>, vector<32x128xf32>
      %79 = arith.select %76, %63, %77 : vector<32x128xi1>, vector<32x128xf32>
      %80 = arith.select %76, %54, %77 : vector<32x128xi1>, vector<32x128xf32>
      %81 = arith.select %76, %37, %77 : vector<32x128xi1>, vector<32x128xf32>
      %82 = vector.shape_cast %78 : vector<32x128xf32> to vector<4x8x128xf32>
      %cst_46 = arith.constant dense<0.000000e+00> : vector<8x128xf32>
      %83 = vector.multi_reduction <add>, %82, %cst_46 [0] : vector<4x8x128xf32> to vector<8x128xf32>
      %84 = arith.addf %35, %83 : vector<8x128xf32>
      %85 = vector.shape_cast %79 : vector<32x128xf32> to vector<4x8x128xf32>
      %cst_47 = arith.constant dense<0.000000e+00> : vector<8x128xf32>
      %86 = vector.multi_reduction <add>, %85, %cst_47 [0] : vector<4x8x128xf32> to vector<8x128xf32>
      %87 = arith.addf %35, %86 : vector<8x128xf32>
      %88 = vector.shape_cast %80 : vector<32x128xf32> to vector<4x8x128xf32>
      %cst_48 = arith.constant dense<0.000000e+00> : vector<8x128xf32>
      %89 = vector.multi_reduction <add>, %88, %cst_48 [0] : vector<4x8x128xf32> to vector<8x128xf32>
      %90 = arith.addf %35, %89 : vector<8x128xf32>
      %91 = vector.shape_cast %81 : vector<32x128xf32> to vector<4x8x128xf32>
      %cst_49 = arith.constant dense<0.000000e+00> : vector<8x128xf32>
      %92 = vector.multi_reduction <add>, %91, %cst_49 [0] : vector<4x8x128xf32> to vector<8x128xf32>
      %93 = arith.addf %35, %92 : vector<8x128xf32>
      scf.yield %84, %87, %90, %93 : vector<8x128xf32>, vector<8x128xf32>, vector<8x128xf32>, vector<8x128xf32>
    } else {
      %cst = arith.constant 0.000000e+00 : f32
      %35 = vector.broadcast %cst : f32 to vector<8x128xf32>
      %c0_31 = arith.constant 0 : index
      %c0_32 = arith.constant 0 : index
      %36 = vector.load %arg2[%c0_31, %c0_32] : memref<32x128xf32, #tpu.memory_space<vmem>>, vector<32x128xf32>
      %c0_33 = arith.constant 0 : index
      %c0_34 = arith.constant 0 : index
      %37 = vector.load %arg3[%c0_33, %c0_34] : memref<32x128xf32, #tpu.memory_space<vmem>>, vector<32x128xf32>
      %38 = math.absf %36 : vector<32x128xf32>
      %cst_35 = arith.constant 0.000000e+00 : f32
      %39 = vector.broadcast %cst_35 : f32 to vector<32x128xf32>
      %40 = arith.subf %39, %38 : vector<32x128xf32>
      %41 = math.exp %40 : vector<32x128xf32>
      %cst_36 = arith.constant 1.000000e+00 : f32
      %42 = vector.broadcast %cst_36 : f32 to vector<32x128xf32>
      %43 = arith.addf %42, %41 : vector<32x128xf32>
      %44 = math.log %43 : vector<32x128xf32>
      %cst_37 = arith.constant 0.000000e+00 : f32
      %45 = vector.broadcast %cst_37 : f32 to vector<32x128xf32>
      %46 = arith.maximumf %36, %45 : vector<32x128xf32>
      %47 = arith.mulf %36, %37 : vector<32x128xf32>
      %48 = arith.subf %46, %47 : vector<32x128xf32>
      %49 = arith.addf %48, %44 : vector<32x128xf32>
      %50 = tpu.reciprocal %43 {approx = true} : vector<32x128xf32> -> vector<32x128xf32>
      %cst_38 = arith.constant 0.000000e+00 : f32
      %51 = vector.broadcast %cst_38 : f32 to vector<32x128xf32>
      %52 = arith.cmpf oge, %36, %51 : vector<32x128xf32>
      %53 = arith.mulf %41, %50 : vector<32x128xf32>
      %54 = arith.select %52, %50, %53 : vector<32x128xi1>, vector<32x128xf32>
      %cst_39 = arith.constant 2.000000e+00 : f32
      %55 = vector.broadcast %cst_39 : f32 to vector<32x128xf32>
      %56 = arith.mulf %55, %54 : vector<32x128xf32>
      %cst_40 = arith.constant 1.000000e+00 : f32
      %57 = vector.broadcast %cst_40 : f32 to vector<32x128xf32>
      %58 = arith.subf %57, %56 : vector<32x128xf32>
      %59 = arith.mulf %37, %58 : vector<32x128xf32>
      %60 = arith.addf %54, %59 : vector<32x128xf32>
      %61 = arith.mulf %60, %60 : vector<32x128xf32>
      %62 = arith.mulf %61, %49 : vector<32x128xf32>
      %63 = arith.mulf %54, %37 : vector<32x128xf32>
      %64 = vector.shape_cast %62 : vector<32x128xf32> to vector<4x8x128xf32>
      %cst_41 = arith.constant dense<0.000000e+00> : vector<8x128xf32>
      %65 = vector.multi_reduction <add>, %64, %cst_41 [0] : vector<4x8x128xf32> to vector<8x128xf32>
      %66 = arith.addf %35, %65 : vector<8x128xf32>
      %67 = vector.shape_cast %63 : vector<32x128xf32> to vector<4x8x128xf32>
      %cst_42 = arith.constant dense<0.000000e+00> : vector<8x128xf32>
      %68 = vector.multi_reduction <add>, %67, %cst_42 [0] : vector<4x8x128xf32> to vector<8x128xf32>
      %69 = arith.addf %35, %68 : vector<8x128xf32>
      %70 = vector.shape_cast %54 : vector<32x128xf32> to vector<4x8x128xf32>
      %cst_43 = arith.constant dense<0.000000e+00> : vector<8x128xf32>
      %71 = vector.multi_reduction <add>, %70, %cst_43 [0] : vector<4x8x128xf32> to vector<8x128xf32>
      %72 = arith.addf %35, %71 : vector<8x128xf32>
      %73 = vector.shape_cast %37 : vector<32x128xf32> to vector<4x8x128xf32>
      %cst_44 = arith.constant dense<0.000000e+00> : vector<8x128xf32>
      %74 = vector.multi_reduction <add>, %73, %cst_44 [0] : vector<4x8x128xf32> to vector<8x128xf32>
      %75 = arith.addf %35, %74 : vector<8x128xf32>
      scf.yield %66, %69, %72, %75 : vector<8x128xf32>, vector<8x128xf32>, vector<8x128xf32>, vector<8x128xf32>
    }
    %c0 = arith.constant 0 : index
    %c0_3 = arith.constant 0 : index
    %c0_4 = arith.constant 0 : index
    %c0_5 = arith.constant 0 : index
    %11 = vector.load %arg4[%c0, %c0_3, %c0_4, %c0_5] : memref<1x4x8x128xf32, #tpu.memory_space<vmem>>, vector<1x1x8x128xf32>
    %12 = vector.shape_cast %11 : vector<1x1x8x128xf32> to vector<8x128xf32>
    %13 = arith.addf %12, %10#0 : vector<8x128xf32>
    %c0_6 = arith.constant 0 : index
    %c0_7 = arith.constant 0 : index
    %c0_8 = arith.constant 0 : index
    %c0_9 = arith.constant 0 : index
    %14 = vector.load %arg4[%c0_6, %c0_7, %c0_8, %c0_9] : memref<1x4x8x128xf32, #tpu.memory_space<vmem>>, vector<1x1x8x128xf32>
    %15 = vector.shape_cast %14 : vector<1x1x8x128xf32> to vector<8x128xf32>
    %16 = vector.shape_cast %13 : vector<8x128xf32> to vector<1x1x8x128xf32>
    tpu.vector_store %arg4[%c0_6, %c0_7, %c0_8, %c0_9], %16 {strides = array<i32>} : memref<1x4x8x128xf32, #tpu.memory_space<vmem>>, vector<1x1x8x128xf32>,
    %c0_10 = arith.constant 0 : index
    %c1 = arith.constant 1 : index
    %c0_11 = arith.constant 0 : index
    %c0_12 = arith.constant 0 : index
    %17 = vector.load %arg4[%c0_10, %c1, %c0_11, %c0_12] : memref<1x4x8x128xf32, #tpu.memory_space<vmem>>, vector<1x1x8x128xf32>
    %18 = vector.shape_cast %17 : vector<1x1x8x128xf32> to vector<8x128xf32>
    %19 = arith.addf %18, %10#1 : vector<8x128xf32>
    %c0_13 = arith.constant 0 : index
    %c1_14 = arith.constant 1 : index
    %c0_15 = arith.constant 0 : index
    %c0_16 = arith.constant 0 : index
    %20 = vector.load %arg4[%c0_13, %c1_14, %c0_15, %c0_16] : memref<1x4x8x128xf32, #tpu.memory_space<vmem>>, vector<1x1x8x128xf32>
    %21 = vector.shape_cast %20 : vector<1x1x8x128xf32> to vector<8x128xf32>
    %22 = vector.shape_cast %19 : vector<8x128xf32> to vector<1x1x8x128xf32>
    tpu.vector_store %arg4[%c0_13, %c1_14, %c0_15, %c0_16], %22 {strides = array<i32>} : memref<1x4x8x128xf32, #tpu.memory_space<vmem>>, vector<1x1x8x128xf32>,
    %c0_17 = arith.constant 0 : index
    %c2 = arith.constant 2 : index
    %c0_18 = arith.constant 0 : index
    %c0_19 = arith.constant 0 : index
    %23 = vector.load %arg4[%c0_17, %c2, %c0_18, %c0_19] : memref<1x4x8x128xf32, #tpu.memory_space<vmem>>, vector<1x1x8x128xf32>
    %24 = vector.shape_cast %23 : vector<1x1x8x128xf32> to vector<8x128xf32>
    %25 = arith.addf %24, %10#2 : vector<8x128xf32>
    %c0_20 = arith.constant 0 : index
    %c2_21 = arith.constant 2 : index
    %c0_22 = arith.constant 0 : index
    %c0_23 = arith.constant 0 : index
    %26 = vector.load %arg4[%c0_20, %c2_21, %c0_22, %c0_23] : memref<1x4x8x128xf32, #tpu.memory_space<vmem>>, vector<1x1x8x128xf32>
    %27 = vector.shape_cast %26 : vector<1x1x8x128xf32> to vector<8x128xf32>
    %28 = vector.shape_cast %25 : vector<8x128xf32> to vector<1x1x8x128xf32>
    tpu.vector_store %arg4[%c0_20, %c2_21, %c0_22, %c0_23], %28 {strides = array<i32>} : memref<1x4x8x128xf32, #tpu.memory_space<vmem>>, vector<1x1x8x128xf32>,
    %c0_24 = arith.constant 0 : index
    %c3 = arith.constant 3 : index
    %c0_25 = arith.constant 0 : index
    %c0_26 = arith.constant 0 : index
    %29 = vector.load %arg4[%c0_24, %c3, %c0_25, %c0_26] : memref<1x4x8x128xf32, #tpu.memory_space<vmem>>, vector<1x1x8x128xf32>
    %30 = vector.shape_cast %29 : vector<1x1x8x128xf32> to vector<8x128xf32>
    %31 = arith.addf %30, %10#3 : vector<8x128xf32>
    %c0_27 = arith.constant 0 : index
    %c3_28 = arith.constant 3 : index
    %c0_29 = arith.constant 0 : index
    %c0_30 = arith.constant 0 : index
    %32 = vector.load %arg4[%c0_27, %c3_28, %c0_29, %c0_30] : memref<1x4x8x128xf32, #tpu.memory_space<vmem>>, vector<1x1x8x128xf32>
    %33 = vector.shape_cast %32 : vector<1x1x8x128xf32> to vector<8x128xf32>
    %34 = vector.shape_cast %31 : vector<8x128xf32> to vector<1x1x8x128xf32>
    tpu.vector_store %arg4[%c0_27, %c3_28, %c0_29, %c0_30], %34 {strides = array<i32>} : memref<1x4x8x128xf32, #tpu.memory_space<vmem>>, vector<1x1x8x128xf32>,
    return
  }
  func.func @transform_0(%arg0: i32, %arg1: i32) -> (i32, i32) {
    %c1_i32 = arith.constant 1 : i32
    %0 = arith.muli %arg0, %c1_i32 : i32
    %1 = arith.addi %0, %arg1 : i32
    %c0_i32 = arith.constant 0 : i32
    %c0_i32_0 = arith.constant 0 : i32
    return %1, %c0_i32 : i32, i32
  }
  func.func @transform_1(%arg0: i32, %arg1: i32) -> (i32, i32) {
    %c1_i32 = arith.constant 1 : i32
    %0 = arith.muli %arg0, %c1_i32 : i32
    %1 = arith.addi %0, %arg1 : i32
    %c0_i32 = arith.constant 0 : i32
    %c0_i32_0 = arith.constant 0 : i32
    return %1, %c0_i32 : i32, i32
  }
  func.func @transform_2(%arg0: i32, %arg1: i32) -> (i32, i32, i32, i32) {
    %c0_i32 = arith.constant 0 : i32
    %c0_i32_0 = arith.constant 0 : i32
    %c0_i32_1 = arith.constant 0 : i32
    %c0_i32_2 = arith.constant 0 : i32
    return %arg0, %c0_i32, %c0_i32_0, %c0_i32_1 : i32, i32, i32, i32
  }
}

</mosaic_0001>

<llo_original>
// kernel: tpu_custom_call.1
$region0: #{tpu_custom_call.1}
  #allocation0 [shape = 'u32[]', space=smem, size = 0x4, offset = 0x4, fixed_abs, tag = 'smem constant byte address 0x4 - core index']
  #allocation1 [shape = 'u32[144,128]{1,0:T(1,128)}', space=vmem, size = 0x12000, scoped, tag = 'internal scratch']
  %s0 = inlined_call_operand.hbm [shape: f32[16,128], index: 0, kind: input, shape index: {}]
  %s1 = inlined_call_operand.hbm [shape: f32[16,128], index: 1, kind: input, shape index: {}]
  %s2 = inlined_call_operand.hbm [shape: f32[1,4,8,128], index: 2, kind: output, shape index: {}]
  %s3 = sld [smem:[#allocation0]]
  $region38: #{tpu_custom_call.1} parent=0
    _
  %s5 = ssub.s32 1, %s3
  %s6 = scalar_select 0, %s5, %s3
  $region1: #{tpu_custom_call.1} parent=0
    #allocation2 [shape = 'u8[16384]{0}', space=vmem, size = 0x4000, scoped, tag = 'input window, operand 0, single buffered']
    #allocation3 [shape = 's32[1]{0}', space=sflag, size = 0x4, scoped, tag = 'scoped memory for tpu_custom_call.1']
    #allocation4 [shape = 's32[1]{0}', space=sflag, size = 0x4, scoped, tag = 'scoped memory for tpu_custom_call.1']
    #allocation5 [shape = 'u8[16384]{0}', space=vmem, size = 0x4000, scoped, tag = 'input window, operand 1, single buffered']
    #allocation6 [shape = 's32[1]{0}', space=sflag, size = 0x4, scoped, tag = 'scoped memory for tpu_custom_call.1']
    #allocation7 [shape = 'u8[16384]{0}', space=vmem, size = 0x4000, scoped, tag = 'output window, operand 0, single buffered']
    %7 = vsyncpa [#allocation3], 0
    %8 = vsyncpa [#allocation6], 0
    %9 = vsyncpa [#allocation4], 0
    // Predicated region
    $region2: #{tpu_custom_call.1} parent=1 // pred_check
      _
    $region3: #{tpu_custom_call.1} parent=1 // pred_check_branch
      %11 = sbr.rel (0) target = $region5
    $region4: #{tpu_custom_call.1} parent=1 // pred_region
      %s12 = sadd.s32 0, 0
      %s13 = smul.u32 4, %s12
      %s14 = ssub.s32 2, %s13
      %s15 = smul.u32 128, %s14
      %s17 = ssub.s32 512, %s15
      %18 = vsyncadd [#allocation3], %s17
      %p19 = scmp.ne.s32.totalorder 0, %s15
      %s20 = smul.addr %s13, 128
      %s21 = scalar_lea.hbm %s0, %s20
      %s22 = smul.u32 8, %s14
      %s23 = sshll.u32 [#allocation2], 4
      %s24 = int_to_ptr.vmem [resolvable:$true] %s23
      %s25 = sshll.u32 %s22, 4
      %29 = dma.hbm_to_vmem [thread:$0]  (%p19), %s21, %s25, %s24, [#allocation3], 128, 128, 8
    $region5: #{tpu_custom_call.1} parent=1 // pred_fallthru
      _
    // Predicated region
    $region6: #{tpu_custom_call.1} parent=1 // pred_check
      _
    $region7: #{tpu_custom_call.1} parent=1 // pred_check_branch
      %31 = sbr.rel (0) target = $region9
    $region8: #{tpu_custom_call.1} parent=1 // pred_region
      %s32 = sadd.s32 0, 0
      %s33 = smul.u32 4, %s32
      %s34 = ssub.s32 2, %s33
      %s35 = smul.u32 128, %s34
      %s37 = ssub.s32 512, %s35
      %38 = vsyncadd [#allocation6], %s37
      %p39 = scmp.ne.s32.totalorder 0, %s35
      %s40 = smul.addr %s33, 128
      %s41 = scalar_lea.hbm %s1, %s40
      %s42 = smul.u32 8, %s34
      %s43 = sshll.u32 [#allocation5], 4
      %s44 = int_to_ptr.vmem [resolvable:$true] %s43
      %s45 = sshll.u32 %s42, 4
      %49 = dma.hbm_to_vmem [thread:$0]  (%p39), %s41, %s45, %s44, [#allocation6], 128, 128, 8
    $region9: #{tpu_custom_call.1} parent=1 // pred_fallthru
      _
    // Predicated region
    $region10: #{tpu_custom_call.1} parent=1 // pred_check
      _
    $region11: #{tpu_custom_call.1} parent=1 // pred_check_branch
      %51 = sbr.rel (0) target = $region13
    $region12: #{tpu_custom_call.1} parent=1 // pred_region
      %52 = dma.done [#allocation3], 512
    $region13: #{tpu_custom_call.1} parent=1 // pred_fallthru
      _
    // Predicated region
    $region14: #{tpu_custom_call.1} parent=1 // pred_check
      _
    $region15: #{tpu_custom_call.1} parent=1 // pred_check_branch
      %54 = sbr.rel (0) target = $region17
    $region16: #{tpu_custom_call.1} parent=1 // pred_region
      %55 = dma.done [#allocation6], 512
    $region17: #{tpu_custom_call.1} parent=1 // pred_fallthru
      _
    %s56 = sadd.s32 0, 0
    %s57 = smul.u32 4, %s56
    %s58 = ssub.s32 2, %s57
    %s59 = smul.u32 128, %s58
    %s60 = sadd.s32 0, 0
    %s61 = smul.u32 4, %s60
    %s62 = ssub.s32 2, %s61
    %s63 = smul.u32 128, %s62
    %p64 = scmp.eq.s32.totalorder 0, 0
    // Predicated region
    $region18: #{tpu_custom_call.1} parent=1 // pred_check
      %p65 = pneg %p64
    $region19: #{tpu_custom_call.1} parent=1 // pred_check_branch
      %67 = sbr.rel (%p65) target = $region21
    $region20: #{tpu_custom_call.1} parent=1 // pred_region
      %68 = vst [vmem:[#allocation7] sm:$0xff] 0.0
      %69 = vst [vmem:[#allocation7 + $0x8] sm:$0xff] 0.0
      %70 = vst [vmem:[#allocation7 + $0x10] sm:$0xff] 0.0
      %71 = vst [vmem:[#allocation7 + $0x18] sm:$0xff] 0.0
    $region21: #{tpu_custom_call.1} parent=1 // pred_fallthru
      _
    %s72 = sadd.s32 0, 0
    %s73 = smul.u32 %s72, 32
    %s74 = sadd.s32 %s73, 32
    %p75 = scmp.gt.s32.totalorder %s74, 16
    // Predicated region
    $region22: #{tpu_custom_call.1} parent=1 // pred_check
      %p76 = pneg %p75
    $region23: #{tpu_custom_call.1} parent=1 // pred_check_branch
      %78 = sbr.rel (%p76) target = $region25
    $region24: #{tpu_custom_call.1} parent=1 // pred_region
      %v79 = vld [vmem:[#allocation2] sm:$0xff]
      %v80 = vld [vmem:[#allocation2 + $0x8] sm:$0xff]
      %v81 = vld [vmem:[#allocation2 + $0x10] sm:$0xff]
      %v82 = vld [vmem:[#allocation2 + $0x18] sm:$0xff]
      %v83 = vld [vmem:[#allocation5] sm:$0xff]
      %v84 = vld [vmem:[#allocation5 + $0x8] sm:$0xff]
      %v85 = vld [vmem:[#allocation5 + $0x10] sm:$0xff]
      %v86 = vld [vmem:[#allocation5 + $0x18] sm:$0xff]
      %v87 = vand.u32 2147483647, %v79
      %v88 = vand.u32 2147483647, %v80
      %v89 = vand.u32 2147483647, %v81
      %v90 = vand.u32 2147483647, %v82
      %v91 = vsub.f32 0.0, %v87
      %v92 = vsub.f32 0.0, %v88
      %v93 = vsub.f32 0.0, %v89
      %v94 = vsub.f32 0.0, %v90
      %v95 = vmul.f32 %v91, 1.442695
      %v96 = vpow.pop %v95
      %v97 = vmul.f32 %v92, 1.442695
      %v98 = vpow.pop %v97
      %v99 = vmul.f32 %v93, 1.442695
      %v100 = vpow.pop %v99
      %v101 = vmul.f32 %v94, 1.442695
      %v102 = vpow.pop %v101
      %v103 = vadd.f32 %v96, 1.0
      %v104 = vadd.f32 %v98, 1.0
      %v105 = vadd.f32 %v100, 1.0
      %v106 = vadd.f32 %v102, 1.0
      %v107 = vlog2.pop %v103
      %v108 = vmul.f32 %v107, 0.6931472
      %v109 = vlog2.pop %v104
      %v110 = vmul.f32 %v109, 0.6931472
      %v111 = vlog2.pop %v105
      %v112 = vmul.f32 %v111, 0.6931472
      %v113 = vlog2.pop %v106
      %v114 = vmul.f32 %v113, 0.6931472
      %v115 = vmax.f32 %v79, 0.0
      %v116 = vmax.f32 %v80, 0.0
      %v117 = vmax.f32 %v81, 0.0
      %v118 = vmax.f32 %v82, 0.0
      %v119 = vmul.f32 %v79, %v83
      %v120 = vmul.f32 %v80, %v84
      %v121 = vmul.f32 %v81, %v85
      %v122 = vmul.f32 %v82, %v86
      %v123 = vsub.f32 %v115, %v119
      %v124 = vsub.f32 %v116, %v120
      %v125 = vsub.f32 %v117, %v121
      %v126 = vsub.f32 %v118, %v122
      %v127 = vadd.f32 %v123, %v108
      %v128 = vadd.f32 %v124, %v110
      %v129 = vadd.f32 %v125, %v112
      %v130 = vadd.f32 %v126, %v114
      %v131 = vrcp.pop %v103
      %v132 = vrcp.pop %v104
      %v133 = vrcp.pop %v105
      %v134 = vrcp.pop %v106
      %vm135 = vcmp.ge.f32.partialorder %v79, 0.0
      %vm136 = vcmp.ge.f32.partialorder %v80, 0.0
      %vm137 = vcmp.ge.f32.partialorder %v81, 0.0
      %vm138 = vcmp.ge.f32.partialorder %v82, 0.0
      %v139 = vmul.f32 %v96, %v131
      %v140 = vmul.f32 %v98, %v132
      %v141 = vmul.f32 %v100, %v133
      %v142 = vmul.f32 %v102, %v134
      %v143 = vsel %vm135, %v131, %v139
      %v144 = vsel %vm136, %v132, %v140
      %v145 = vsel %vm137, %v133, %v141
      %v146 = vsel %vm138, %v134, %v142
      %v147 = vmul.f32 %v143, 2.0
      %v148 = vmul.f32 %v144, 2.0
      %v149 = vmul.f32 %v145, 2.0
      %v150 = vmul.f32 %v146, 2.0
      %v151 = vsub.f32 1.0, %v147
      %v152 = vsub.f32 1.0, %v148
      %v153 = vsub.f32 1.0, %v149
      %v154 = vsub.f32 1.0, %v150
      %v155 = vmul.f32 %v83, %v151
      %v156 = vmul.f32 %v84, %v152
      %v157 = vmul.f32 %v85, %v153
      %v158 = vmul.f32 %v86, %v154
      %v159 = vadd.f32 %v143, %v155
      %v160 = vadd.f32 %v144, %v156
      %v161 = vadd.f32 %v145, %v157
      %v162 = vadd.f32 %v146, %v158
      %v163 = vmul.f32 %v159, %v159
      %v164 = vmul.f32 %v160, %v160
      %v165 = vmul.f32 %v161, %v161
      %v166 = vmul.f32 %v162, %v162
      %v167 = vmul.f32 %v163, %v127
      %v168 = vmul.f32 %v164, %v128
      %v169 = vmul.f32 %v165, %v129
      %v170 = vmul.f32 %v166, %v130
      %v171 = vmul.f32 %v143, %v83
      %v172 = vmul.f32 %v144, %v84
      %v173 = vmul.f32 %v145, %v85
      %v174 = vmul.f32 %v146, %v86
      %v175 = vlaneseq
      %v176 = vshrl.u32 %v175, 7
      %v177 = vadd.s32 %v176, 8
      %v178 = vadd.s32 %v176, 16
      %v179 = vadd.s32 %v176, 24
      %v180 = vstv %s73
      %v181 = vadd.s32 %v180, %v176
      %v182 = vadd.s32 %v180, %v177
      %v183 = vadd.s32 %v180, %v178
      %v184 = vadd.s32 %v180, %v179
      %v185 = vlaneseq
      %v186 = vand.u32 %v185, 127
      %vm187 = vcmp.lt.s32.totalorder %v181, 16
      %vm188 = vcmp.lt.s32.totalorder %v182, 16
      %vm189 = vcmp.lt.s32.totalorder %v183, 16
      %vm190 = vcmp.lt.s32.totalorder %v184, 16
      %vm191 = vcmp.eq.s32.totalorder %v181, 16
      %vm192 = vcmp.eq.s32.totalorder %v182, 16
      %vm193 = vcmp.eq.s32.totalorder %v183, 16
      %vm194 = vcmp.eq.s32.totalorder %v184, 16
      %vm195 = vcmp.lt.s32.totalorder %v186, 0
      %vm196 = vmand %vm191, %vm195
      %vm197 = vmand %vm192, %vm195
      %vm198 = vmand %vm193, %vm195
      %vm199 = vmand %vm194, %vm195
      %vm200 = vmor %vm187, %vm196
      %vm201 = vmor %vm188, %vm197
      %vm202 = vmor %vm189, %vm198
      %vm203 = vmor %vm190, %vm199
      %v204 = vsel %vm200, %v167, 0.0
      %v205 = vsel %vm201, %v168, 0.0
      %v206 = vsel %vm202, %v169, 0.0
      %v207 = vsel %vm203, %v170, 0.0
      %v208 = vsel %vm200, %v171, 0.0
      %v209 = vsel %vm201, %v172, 0.0
      %v210 = vsel %vm202, %v173, 0.0
      %v211 = vsel %vm203, %v174, 0.0
      %v212 = vsel %vm200, %v143, 0.0
      %v213 = vsel %vm201, %v144, 0.0
      %v214 = vsel %vm202, %v145, 0.0
      %v215 = vsel %vm203, %v146, 0.0
      %v216 = vsel %vm200, %v83, 0.0
      %v217 = vsel %vm201, %v84, 0.0
      %v218 = vsel %vm202, %v85, 0.0
      %v219 = vsel %vm203, %v86, 0.0
      %v220 = vadd.f32 %v204, %v205
      %v221 = vadd.f32 %v220, %v206
      %v222 = vadd.f32 %v221, %v207
      %v223 = vadd.f32 %v222, 0.0
      %v224 = vadd.f32 %v208, %v209
      %v225 = vadd.f32 %v224, %v210
      %v226 = vadd.f32 %v225, %v211
      %v227 = vadd.f32 %v226, 0.0
      %v228 = vadd.f32 %v212, %v213
      %v229 = vadd.f32 %v228, %v214
      %v230 = vadd.f32 %v229, %v215
      %v231 = vadd.f32 %v230, 0.0
      %v232 = vadd.f32 %v216, %v217
      %v233 = vadd.f32 %v232, %v218
      %v234 = vadd.f32 %v233, %v219
      %v235 = vadd.f32 %v234, 0.0
    $region25: #{tpu_custom_call.1} parent=1 // pred_fallthru
      %v236 = vphi 0, %v223
      %v237 = vphi 0, %v227
      %v238 = vphi 0, %v231
      %v239 = vphi 0, %v235
    %p240 = pneg %p75
    // Predicated region
    $region26: #{tpu_custom_call.1} parent=1 // pred_check
      _
    $region27: #{tpu_custom_call.1} parent=1 // pred_check_branch
      %242 = sbr.rel (%p75) target = $region29
    $region28: #{tpu_custom_call.1} parent=1 // pred_region
      %v243 = vld [vmem:[#allocation2] sm:$0xff]
      %v244 = vld [vmem:[#allocation2 + $0x8] sm:$0xff]
      %v245 = vld [vmem:[#allocation2 + $0x10] sm:$0xff]
      %v246 = vld [vmem:[#allocation2 + $0x18] sm:$0xff]
      %v247 = vld [vmem:[#allocation5] sm:$0xff]
      %v248 = vld [vmem:[#allocation5 + $0x8] sm:$0xff]
      %v249 = vld [vmem:[#allocation5 + $0x10] sm:$0xff]
      %v250 = vld [vmem:[#allocation5 + $0x18] sm:$0xff]
      %v251 = vand.u32 2147483647, %v243
      %v252 = vand.u32 2147483647, %v244
      %v253 = vand.u32 2147483647, %v245
      %v254 = vand.u32 2147483647, %v246
      %v255 = vsub.f32 0.0, %v251
      %v256 = vsub.f32 0.0, %v252
      %v257 = vsub.f32 0.0, %v253
      %v258 = vsub.f32 0.0, %v254
      %v259 = vmul.f32 %v255, 1.442695
      %v260 = vpow.pop %v259
      %v261 = vmul.f32 %v256, 1.442695
      %v262 = vpow.pop %v261
      %v263 = vmul.f32 %v257, 1.442695
      %v264 = vpow.pop %v263
      %v265 = vmul.f32 %v258, 1.442695
      %v266 = vpow.pop %v265
      %v267 = vadd.f32 %v260, 1.0
      %v268 = vadd.f32 %v262, 1.0
      %v269 = vadd.f32 %v264, 1.0
      %v270 = vadd.f32 %v266, 1.0
      %v271 = vlog2.pop %v267
      %v272 = vmul.f32 %v271, 0.6931472
      %v273 = vlog2.pop %v268
      %v274 = vmul.f32 %v273, 0.6931472
      %v275 = vlog2.pop %v269
      %v276 = vmul.f32 %v275, 0.6931472
      %v277 = vlog2.pop %v270
      %v278 = vmul.f32 %v277, 0.6931472
      %v279 = vmax.f32 %v243, 0.0
      %v280 = vmax.f32 %v244, 0.0
      %v281 = vmax.f32 %v245, 0.0
      %v282 = vmax.f32 %v246, 0.0
      %v283 = vmul.f32 %v243, %v247
      %v284 = vmul.f32 %v244, %v248
      %v285 = vmul.f32 %v245, %v249
      %v286 = vmul.f32 %v246, %v250
      %v287 = vsub.f32 %v279, %v283
      %v288 = vsub.f32 %v280, %v284
      %v289 = vsub.f32 %v281, %v285
      %v290 = vsub.f32 %v282, %v286
      %v291 = vadd.f32 %v287, %v272
      %v292 = vadd.f32 %v288, %v274
      %v293 = vadd.f32 %v289, %v276
      %v294 = vadd.f32 %v290, %v278
      %v295 = vrcp.pop %v267
      %v296 = vrcp.pop %v268
      %v297 = vrcp.pop %v269
      %v298 = vrcp.pop %v270
      %vm299 = vcmp.ge.f32.partialorder %v243, 0.0
      %vm300 = vcmp.ge.f32.partialorder %v244, 0.0
      %vm301 = vcmp.ge.f32.partialorder %v245, 0.0
      %vm302 = vcmp.ge.f32.partialorder %v246, 0.0
      %v303 = vmul.f32 %v260, %v295
      %v304 = vmul.f32 %v262, %v296
      %v305 = vmul.f32 %v264, %v297
      %v306 = vmul.f32 %v266, %v298
      %v307 = vsel %vm299, %v295, %v303
      %v308 = vsel %vm300, %v296, %v304
      %v309 = vsel %vm301, %v297, %v305
      %v310 = vsel %vm302, %v298, %v306
      %v311 = vmul.f32 %v307, 2.0
      %v312 = vmul.f32 %v308, 2.0
      %v313 = vmul.f32 %v309, 2.0
      %v314 = vmul.f32 %v310, 2.0
      %v315 = vsub.f32 1.0, %v311
      %v316 = vsub.f32 1.0, %v312
      %v317 = vsub.f32 1.0, %v313
      %v318 = vsub.f32 1.0, %v314
      %v319 = vmul.f32 %v247, %v315
      %v320 = vmul.f32 %v248, %v316
      %v321 = vmul.f32 %v249, %v317
      %v322 = vmul.f32 %v250, %v318
      %v323 = vadd.f32 %v307, %v319
      %v324 = vadd.f32 %v308, %v320
      %v325 = vadd.f32 %v309, %v321
      %v326 = vadd.f32 %v310, %v322
      %v327 = vmul.f32 %v323, %v323
      %v328 = vmul.f32 %v324, %v324
      %v329 = vmul.f32 %v325, %v325
      %v330 = vmul.f32 %v326, %v326
      %v331 = vmul.f32 %v327, %v291
      %v332 = vmul.f32 %v328, %v292
      %v333 = vmul.f32 %v329, %v293
      %v334 = vmul.f32 %v330, %v294
      %v335 = vmul.f32 %v307, %v247
      %v336 = vmul.f32 %v308, %v248
      %v337 = vmul.f32 %v309, %v249
      %v338 = vmul.f32 %v310, %v250
      %v339 = vadd.f32 %v331, %v332
      %v340 = vadd.f32 %v339, %v333
      %v341 = vadd.f32 %v340, %v334
      %v342 = vadd.f32 %v341, 0.0
      %v343 = vadd.f32 %v335, %v336
      %v344 = vadd.f32 %v343, %v337
      %v345 = vadd.f32 %v344, %v338
      %v346 = vadd.f32 %v345, 0.0
      %v347 = vadd.f32 %v307, %v308
      %v348 = vadd.f32 %v347, %v309
      %v349 = vadd.f32 %v348, %v310
      %v350 = vadd.f32 %v349, 0.0
      %v351 = vadd.f32 %v247, %v248
      %v352 = vadd.f32 %v351, %v249
      %v353 = vadd.f32 %v352, %v250
      %v354 = vadd.f32 %v353, 0.0
    $region29: #{tpu_custom_call.1} parent=1 // pred_fallthru
      %v355 = vphi %v236, %v342
      %v356 = vphi %v237, %v346
      %v357 = vphi %v238, %v350
      %v358 = vphi %v239, %v354
    %v359 = vld [vmem:[#allocation7] sm:$0xff]
    %v360 = vadd.f32 %v359, %v355
    %361 = vst [vmem:[#allocation7] sm:$0xff] %v360
    %s362 = scalar_lea.vmem [#allocation7], 8
    %v363 = vld [vmem:[%s362] sm:$0xff]
    %v364 = vadd.f32 %v363, %v356
    %365 = vst [vmem:[%s362] sm:$0xff] %v364
    %s366 = scalar_lea.vmem [#allocation7], 16
    %v367 = vld [vmem:[%s366] sm:$0xff]
    %v368 = vadd.f32 %v367, %v357
    %369 = vst [vmem:[%s366] sm:$0xff] %v368
    %s370 = scalar_lea.vmem [#allocation7], 24
    %v371 = vld [vmem:[%s370] sm:$0xff]
    %v372 = vadd.f32 %v371, %v358
    %373 = vst [vmem:[%s370] sm:$0xff] %v372
    // Predicated region
    $region30: #{tpu_custom_call.1} parent=1 // pred_check
      _
    $region31: #{tpu_custom_call.1} parent=1 // pred_check_branch
      %375 = sbr.rel (0) target = $region33
    $region32: #{tpu_custom_call.1} parent=1 // pred_region
      %s377 = ssub.s32 512, 512
      %378 = vsyncadd [#allocation4], %s377
      %s379 = sshll.u32 [#allocation7], 4
      %s380 = int_to_ptr.vmem [resolvable:$true] %s379
      %385 = dma.vmem_to_hbm [thread:$0]  %s380, 512, %s2, [#allocation4], 128, 128, 8
    $region33: #{tpu_custom_call.1} parent=1 // pred_fallthru
      _
    // Predicated region
    $region34: #{tpu_custom_call.1} parent=1 // pred_check
      _
    $region35: #{tpu_custom_call.1} parent=1 // pred_check_branch
      %387 = sbr.rel (0) target = $region37
    $region36: #{tpu_custom_call.1} parent=1 // pred_region
      %388 = dma.done [#allocation4], 512
    $region37: #{tpu_custom_call.1} parent=1 // pred_fallthru
      _
    %389 = vsyncpa [#allocation3], 1
    %390 = vsyncpa [#allocation6], 1
    %391 = vsyncpa [#allocation4], 1

</llo_original>
